<compile_context>
chip_gen: v7x
topology: tpu7x:2x2x1
jax: 0.10.0
libtpu: 0.0.40
codegen_flags: <defaults>
</compile_context>

<pallas_src>
import jax
import jax.numpy as jnp
from jax.experimental import pallas as pl
from jax.experimental.pallas import tpu as pltpu


def _round_up(x, m):
    return ((x + m - 1) // m) * m


def simple_nn_kernel(xT_ref, w1_ref, b1_ref, w2_ref, b2_ref, oT_ref):
    """One batch-column tile of out.T = W2 @ relu(W1 @ x.T + b1) + b2.

    xT_ref: [D_in, TB]   (batch on the lane axis)
    w1_ref: [H, D_in]    (native PyTorch layout)
    b1_ref: [H, 1]
    w2_ref: [D_out, H]
    b2_ref: [D_out, 1]
    oT_ref: [D_out, TB]  (lane-dense output tile)
    """
    xT = xT_ref[...]

    # fc1 on the MXU, f32 accumulation; MXU N-dim = TB (128/256 lanes filled).
    h = jnp.dot(w1_ref[...], xT, preferred_element_type=jnp.float32)   # [H, TB]
    h = h + b1_ref[...].astype(jnp.float32)       # bias add in f32 (VPU)
    h = jnp.maximum(h, 0.0)                       # ReLU in f32

    # fc2: cast activations to the parameter dtype only for the MXU operands
    # (no-op for f32 params; bf16 params -> bf16 MXU on v6e/v7x).
    y = jnp.dot(w2_ref[...], h.astype(w2_ref.dtype),
                preferred_element_type=jnp.float32)                     # [D_out, TB]
    y = y + b2_ref[...].astype(jnp.float32)

    oT_ref[...] = y.astype(oT_ref.dtype)


def simple_nn_forward(x, w1, b1, w2, b2, *, block_b=2048):
    """Forward pass of SimpleNN (y = relu(x @ W1.T + b1) @ W2.T + b2).

    x:  [B, D_in]
    w1: [H, D_in], b1: [H]      (PyTorch nn.Linear layout)
    w2: [D_out, H], b2: [D_out]
    """
    B, d_in = x.shape
    h_dim, d_in2 = w1.shape
    d_out, _ = w2.shape
    assert d_in2 == d_in

    # Batch tile = in-kernel lane dimension: multiple of 128, as large as VMEM
    # comfortably allows.  tb=2048 uses ~1.5 MiB of VMEM per step (x tile +
    # f32 hidden + out tile, double-buffered) -- safe on v5e/v6e (128 MiB) and
    # v7x (64 MiB).  Small B collapses to a single grid step.
    tb = min(_round_up(max(B, 1), 128), _round_up(block_b, 128))
    b_pad = _round_up(B, tb)
    grid = (b_pad // tb,)
    # TODO(synk): on v7x, a single grid step feeds only one of the two
    # TensorCores; for large B that fits one block_b tile, halve tb to get two
    # "parallel" steps.

    if b_pad != B:
        x = jnp.pad(x, ((0, b_pad - B), (0, 0)))   # zero rows, sliced off below

    # Layout plumbing (not compute hoisting): put batch on the lane axis so
    # output stores are lane-dense.  Weights stay in native layout; biases are
    # reshaped (free) to column vectors that lane-broadcast in-kernel.
    xT = x.T                                    # [D_in, B_pad]
    b1c = b1.reshape(h_dim, 1)
    b2c = b2.reshape(d_out, 1)

    outT = pl.pallas_call(
        simple_nn_kernel,
        out_shape=jax.ShapeDtypeStruct((d_out, b_pad), x.dtype),
        grid=grid,
        in_specs=[
            pl.BlockSpec((d_in, tb), lambda i: (0, i)),      # stream x.T tiles
            pl.BlockSpec((h_dim, d_in), lambda i: (0, 0)),   # resident params
            pl.BlockSpec((h_dim, 1), lambda i: (0, 0)),
            pl.BlockSpec((d_out, h_dim), lambda i: (0, 0)),
            pl.BlockSpec((d_out, 1), lambda i: (0, 0)),
        ],
        out_specs=pl.BlockSpec((d_out, tb), lambda i: (0, i)),
        compiler_params=pltpu.CompilerParams(
            dimension_semantics=("parallel",)),              # megacore on v7x
    )(xT, w1, b1c, w2, b2c)

    return outT.T[:B]                            # [B, D_out]


if __name__ == "__main__":
    # input_size=32, hidden_size=64, output_size=16 (small shapes implied by
    # the module); batch 256 runs as a single (32, 256) batch-column tile.
    B, D_in, H, D_out = 256, 32, 64, 16

    key = jax.random.PRNGKey(0)
    kx, kw1, kb1, kw2, kb2 = jax.random.split(key, 5)

    x = jax.random.normal(kx, (B, D_in), dtype=jnp.float32)

    # Kaiming-uniform-like init bounds, as in nn.Linear (PyTorch layout).
    bound1 = 1.0 / jnp.sqrt(D_in)
    w1 = jax.random.uniform(kw1, (H, D_in), jnp.float32, -bound1, bound1)
    b1 = jax.random.uniform(kb1, (H,), jnp.float32, -bound1, bound1)
    bound2 = 1.0 / jnp.sqrt(H)
    w2 = jax.random.uniform(kw2, (D_out, H), jnp.float32, -bound2, bound2)
    b2 = jax.random.uniform(kb2, (D_out,), jnp.float32, -bound2, bound2)

    fwd = jax.jit(simple_nn_forward)

    # Main check (B multiple of 128: no padding path).
    out = jax.block_until_ready(fwd(x, w1, b1, w2, b2))
    ref = jnp.maximum(x @ w1.T + b1, 0.0) @ w2.T + b2
    assert out.shape == (B, D_out)
    assert jnp.allclose(out, ref, atol=1e-5, rtol=1e-5)

    # Ragged-batch check (exercises the pad + slice path).
    x2 = x[:200]
    out2 = jax.block_until_ready(fwd(x2, w1, b1, w2, b2))
    ref2 = jnp.maximum(x2 @ w1.T + b1, 0.0) @ w2.T + b2
    assert out2.shape == (200, D_out)
    assert jnp.allclose(out2, ref2, atol=1e-5, rtol=1e-5)

    print("KERNEL_OK")
</pallas_src>

<mosaic_0001>
module attributes {stable_mosaic.version = 11 : i64} {
  func.func @simple_nn_kernel(%arg0: i32, %arg1: memref<32x256xf32, #tpu.memory_space<vmem>>, %arg2: memref<64x32xf32, #tpu.memory_space<vmem>>, %arg3: memref<64x1xf32, #tpu.memory_space<vmem>>, %arg4: memref<16x64xf32, #tpu.memory_space<vmem>>, %arg5: memref<16x1xf32, #tpu.memory_space<vmem>>, %arg6: memref<16x256xf32, #tpu.memory_space<vmem>>) attributes {dimension_semantics = [#tpu.dimension_semantics<parallel>], iteration_bounds = array<i64: 1>, scalar_prefetch = 0 : i64, scratch_operands = 0 : i64, tpu.core_type = #tpu.core_type<tc>, window_params = [{transform_indices = @transform_0, window_bounds = array<i64: 32, 256>}, {pipeline_mode = #tpu.pipeline_mode<synchronous>, transform_indices = @transform_1, window_bounds = array<i64: 64, 32>}, {pipeline_mode = #tpu.pipeline_mode<synchronous>, transform_indices = @transform_2, window_bounds = array<i64: 64, 1>}, {pipeline_mode = #tpu.pipeline_mode<synchronous>, transform_indices = @transform_3, window_bounds = array<i64: 16, 64>}, {pipeline_mode = #tpu.pipeline_mode<synchronous>, transform_indices = @transform_4, window_bounds = array<i64: 16, 1>}, {transform_indices = @transform_5, window_bounds = array<i64: 16, 256>}]} {
    %c0 = arith.constant 0 : index
    %c0_0 = arith.constant 0 : index
    %0 = vector.load %arg1[%c0, %c0_0] : memref<32x256xf32, #tpu.memory_space<vmem>>, vector<32x256xf32>
    %c0_1 = arith.constant 0 : index
    %c0_2 = arith.constant 0 : index
    %1 = vector.load %arg2[%c0_1, %c0_2] : memref<64x32xf32, #tpu.memory_space<vmem>>, vector<64x32xf32>
    %cst = arith.constant dense<0.000000e+00> : vector<64x256xf32>
    %2 = tpu.matmul %1, %0, %cst {dimension_numbers = #tpu.dot_dimension_numbers<[1], [0], [0], [1], [0, 0, 1, 1], [], []>} : vector<64x32xf32>, vector<32x256xf32>, vector<64x256xf32> -> vector<64x256xf32>
    %c0_3 = arith.constant 0 : index
    %c0_4 = arith.constant 0 : index
    %3 = vector.load %arg3[%c0_3, %c0_4] : memref<64x1xf32, #tpu.memory_space<vmem>>, vector<64x1xf32>
    %4 = vector.broadcast %3 : vector<64x1xf32> to vector<64x256xf32>
    %5 = arith.addf %2, %4 : vector<64x256xf32>
    %cst_5 = arith.constant 0.000000e+00 : f32
    %6 = vector.broadcast %cst_5 : f32 to vector<64x256xf32>
    %7 = arith.maximumf %5, %6 : vector<64x256xf32>
    %c0_6 = arith.constant 0 : index
    %c0_7 = arith.constant 0 : index
    %8 = vector.load %arg4[%c0_6, %c0_7] : memref<16x64xf32, #tpu.memory_space<vmem>>, vector<16x64xf32>
    %cst_8 = arith.constant dense<0.000000e+00> : vector<16x256xf32>
    %9 = tpu.matmul %8, %7, %cst_8 {dimension_numbers = #tpu.dot_dimension_numbers<[1], [0], [0], [1], [0, 0, 1, 1], [], []>} : vector<16x64xf32>, vector<64x256xf32>, vector<16x256xf32> -> vector<16x256xf32>
    %c0_9 = arith.constant 0 : index
    %c0_10 = arith.constant 0 : index
    %10 = vector.load %arg5[%c0_9, %c0_10] : memref<16x1xf32, #tpu.memory_space<vmem>>, vector<16x1xf32>
    %11 = vector.broadcast %10 : vector<16x1xf32> to vector<16x256xf32>
    %12 = arith.addf %9, %11 : vector<16x256xf32>
    %c0_11 = arith.constant 0 : index
    %c0_12 = arith.constant 0 : index
    %13 = vector.load %arg6[%c0_11, %c0_12] : memref<16x256xf32, #tpu.memory_space<vmem>>, vector<16x256xf32>
    tpu.vector_store %arg6[%c0_11, %c0_12], %12 {strides = array<i32>} : memref<16x256xf32, #tpu.memory_space<vmem>>, vector<16x256xf32>,
    return
  }
  func.func @transform_0(%arg0: i32) -> (i32, i32) {
    %c0_i32 = arith.constant 0 : i32
    %c0_i32_0 = arith.constant 0 : i32
    return %c0_i32, %arg0 : i32, i32
  }
  func.func @transform_1(%arg0: i32) -> (i32, i32) {
    %c0_i32 = arith.constant 0 : i32
    %c0_i32_0 = arith.constant 0 : i32
    %c0_i32_1 = arith.constant 0 : i32
    return %c0_i32, %c0_i32_0 : i32, i32
  }
  func.func @transform_2(%arg0: i32) -> (i32, i32) {
    %c0_i32 = arith.constant 0 : i32
    %c0_i32_0 = arith.constant 0 : i32
    %c0_i32_1 = arith.constant 0 : i32
    return %c0_i32, %c0_i32_0 : i32, i32
  }
  func.func @transform_3(%arg0: i32) -> (i32, i32) {
    %c0_i32 = arith.constant 0 : i32
    %c0_i32_0 = arith.constant 0 : i32
    %c0_i32_1 = arith.constant 0 : i32
    return %c0_i32, %c0_i32_0 : i32, i32
  }
  func.func @transform_4(%arg0: i32) -> (i32, i32) {
    %c0_i32 = arith.constant 0 : i32
    %c0_i32_0 = arith.constant 0 : i32
    %c0_i32_1 = arith.constant 0 : i32
    return %c0_i32, %c0_i32_0 : i32, i32
  }
  func.func @transform_5(%arg0: i32) -> (i32, i32) {
    %c0_i32 = arith.constant 0 : i32
    %c0_i32_0 = arith.constant 0 : i32
    return %c0_i32, %arg0 : i32, i32
  }
}

</mosaic_0001>

<llo_original>
// kernel: simple_nn_forward.1
$region0: #{simple_nn_forward.1}
  #allocation0 [shape = 'u32[]', space=smem, size = 0x4, offset = 0x4, fixed_abs, tag = 'smem constant byte address 0x4 - core index']
  #allocation1 [shape = 'u32[144,128]{1,0:T(1,128)}', space=vmem, size = 0x12000, scoped, tag = 'internal scratch']
  %s0 = inlined_call_operand.vmem [shape: f32[32,256], index: 0, kind: input, shape index: {}]
  %s1 = inlined_call_operand.vmem [shape: f32[64,32], index: 1, kind: input, shape index: {}]
  %s2 = inlined_call_operand.vmem [shape: f32[64,1], index: 2, kind: input, shape index: {}]
  %s3 = inlined_call_operand.vmem [shape: f32[16,64], index: 3, kind: input, shape index: {}]
  %s4 = inlined_call_operand.vmem [shape: f32[16,1], index: 4, kind: input, shape index: {}]
  %s5 = inlined_call_operand.hbm [shape: f32[16,256], index: 5, kind: output, shape index: {}]
  %s6 = sld [smem:[#allocation0]]
  $region30: #{simple_nn_forward.1} parent=0
    _
  %s8 = ssub.s32 1, %s6
  %s9 = scalar_select 0, %s8, %s6
  $region1: #{simple_nn_forward.1} parent=0
    #allocation2 [shape = 'u8[16384]{0}', space=vmem, size = 0x4000, scoped, tag = 'output window, operand 0, single buffered']
    #allocation3 [shape = 's32[1]{0}', space=sflag, size = 0x4, scoped, tag = 'scoped memory for simple_nn_forward.1']
    %10 = vsyncpa [#allocation3], 0
    // Predicated region
    $region2: #{simple_nn_forward.1} parent=1 // pred_check
      _
    $region3: #{simple_nn_forward.1} parent=1 // pred_check_branch
      %12 = sbr.rel (0) target = $region5
    $region4: #{simple_nn_forward.1} parent=1 // pred_region
      _
    $region5: #{simple_nn_forward.1} parent=1 // pred_fallthru
      _
    // Predicated region
    $region6: #{simple_nn_forward.1} parent=1 // pred_check
      _
    $region7: #{simple_nn_forward.1} parent=1 // pred_check_branch
      %14 = sbr.rel (0) target = $region9
    $region8: #{simple_nn_forward.1} parent=1 // pred_region
      _
    $region9: #{simple_nn_forward.1} parent=1 // pred_fallthru
      _
    // Predicated region
    $region10: #{simple_nn_forward.1} parent=1 // pred_check
      _
    $region11: #{simple_nn_forward.1} parent=1 // pred_check_branch
      %16 = sbr.rel (0) target = $region13
    $region12: #{simple_nn_forward.1} parent=1 // pred_region
      _
    $region13: #{simple_nn_forward.1} parent=1 // pred_fallthru
      _
    // Predicated region
    $region14: #{simple_nn_forward.1} parent=1 // pred_check
      _
    $region15: #{simple_nn_forward.1} parent=1 // pred_check_branch
      %18 = sbr.rel (0) target = $region17
    $region16: #{simple_nn_forward.1} parent=1 // pred_region
      _
    $region17: #{simple_nn_forward.1} parent=1 // pred_fallthru
      _
    // Predicated region
    $region18: #{simple_nn_forward.1} parent=1 // pred_check
      _
    $region19: #{simple_nn_forward.1} parent=1 // pred_check_branch
      %20 = sbr.rel (0) target = $region21
    $region20: #{simple_nn_forward.1} parent=1 // pred_region
      _
    $region21: #{simple_nn_forward.1} parent=1 // pred_fallthru
      _
    %v21 = vld [vmem:[%s0] sm:$0xff]
    %v22 = vld [vmem:[%s0 + $0x8] sm:$0xff]
    %v23 = vld [vmem:[%s0 + $0x10] sm:$0xff]
    %v24 = vld [vmem:[%s0 + $0x18] sm:$0xff]
    %v25 = vld [vmem:[%s0 + $0x20] sm:$0xff]
    %v26 = vld [vmem:[%s0 + $0x28] sm:$0xff]
    %v27 = vld [vmem:[%s0 + $0x30] sm:$0xff]
    %v28 = vld [vmem:[%s0 + $0x38] sm:$0xff]
    %v29 = vld [vmem:[%s1] sm:$0xff]
    %v30 = vld [vmem:[%s1 + $0x8] sm:$0xff]
    %v31 = vld [vmem:[%s1 + $0x10] sm:$0xff]
    %v32 = vld [vmem:[%s1 + $0x18] sm:$0xff]
    %v33 = vld [vmem:[%s1 + $0x20] sm:$0xff]
    %v34 = vld [vmem:[%s1 + $0x28] sm:$0xff]
    %v35 = vld [vmem:[%s1 + $0x30] sm:$0xff]
    %v36 = vld [vmem:[%s1 + $0x38] sm:$0xff]
    %v37 = vld [vmem:[%s2] sm:$0xff]
    %v38 = vld [vmem:[%s2 + $0x8] sm:$0xff]
    %v39 = vld [vmem:[%s2 + $0x10] sm:$0xff]
    %v40 = vld [vmem:[%s2 + $0x18] sm:$0xff]
    %v41 = vld [vmem:[%s2 + $0x20] sm:$0xff]
    %v42 = vld [vmem:[%s2 + $0x28] sm:$0xff]
    %v43 = vld [vmem:[%s2 + $0x30] sm:$0xff]
    %v44 = vld [vmem:[%s2 + $0x38] sm:$0xff]
    %46 = vset.pattern.permute.xlu0 0
    %47 = vperm.xlu0 %46, %v37
    %v48 = vpop.permute.xlu0 %47
    %51 = vset.pattern.permute.xlu0 0
    %52 = vperm.xlu0 %51, %v38
    %v53 = vpop.permute.xlu0 %52
    %56 = vset.pattern.permute.xlu0 0
    %57 = vperm.xlu0 %56, %v39
    %v58 = vpop.permute.xlu0 %57
    %61 = vset.pattern.permute.xlu0 0
    %62 = vperm.xlu0 %61, %v40
    %v63 = vpop.permute.xlu0 %62
    %66 = vset.pattern.permute.xlu0 0
    %67 = vperm.xlu0 %66, %v41
    %v68 = vpop.permute.xlu0 %67
    %71 = vset.pattern.permute.xlu0 0
    %72 = vperm.xlu0 %71, %v42
    %v73 = vpop.permute.xlu0 %72
    %76 = vset.pattern.permute.xlu0 0
    %77 = vperm.xlu0 %76, %v43
    %v78 = vpop.permute.xlu0 %77
    %81 = vset.pattern.permute.xlu0 0
    %82 = vperm.xlu0 %81, %v44
    %v83 = vpop.permute.xlu0 %82
    %vm85 = vcmask 261120
    %v87 = vsel %vm85, %v29, 0
    %v90 = vsel %vm85, %v30, 0
    %v93 = vsel %vm85, %v31, 0
    %v96 = vsel %vm85, %v32, 0
    %v99 = vsel %vm85, %v33, 0
    %v102 = vsel %vm85, %v34, 0
    %v105 = vsel %vm85, %v35, 0
    %v108 = vsel %vm85, %v36, 0
    %110 = vmatprep.subr.mxu0 %v22
    %111 = vmatpush1.msra.mxu0 %v21
    %112 = vmatprep.subr.mxu0 %v24
    %113 = vmatpush1.msra.mxu0 %v23
    %114 = vmatprep.subr.mxu0 %v26
    %115 = vmatpush1.msra.mxu0 %v25
    %116 = vmatprep.subr.mxu0 %v28
    %117 = vmatpush1.msra.mxu0 %v27
    %118 = vmatprep.subr.mxu0 0.0
    %119 = vmatpush1.msra.mxu0 0.0
    %120 = vmatprep.subr.mxu0 0.0
    %121 = vmatpush1.msra.mxu0 0.0
    %122 = vmatprep.subr.mxu0 0.0
    %123 = vmatpush1.msra.mxu0 0.0
    %124 = vmatprep.subr.mxu0 0.0
    %125 = vmatpush1.msra.mxu0 0.0
    %126 = vmatprep.subr.mxu0 0.0
    %127 = vmatpush1.msra.mxu0 0.0
    %128 = vmatprep.subr.mxu0 0.0
    %129 = vmatpush1.msra.mxu0 0.0
    %130 = vmatprep.subr.mxu0 0.0
    %131 = vmatpush1.msra.mxu0 0.0
    %132 = vmatprep.subr.mxu0 0.0
    %133 = vmatpush1.msra.mxu0 0.0
    %134 = vmatprep.subr.mxu0 0.0
    %135 = vmatpush1.msra.mxu0 0.0
    %136 = vmatprep.subr.mxu0 0.0
    %137 = vmatpush1.msra.mxu0 0.0
    %138 = vmatprep.subr.mxu0 0.0
    %139 = vmatpush1.msra.mxu0 0.0
    %140 = vmatprep.subr.mxu0 0.0
    %141 = vmatpush1.msra.mxu0 0.0
    %142 = vmatprep.subr.mxu0 0.0
    %143 = vmatpush1.msra.mxu0 0.0
    %144 = vmatprep.subr.mxu0 0.0
    %145 = vmatpush1.msra.mxu0 0.0
    %146 = vmatprep.subr.mxu0 0.0
    %147 = vmatpush1.msra.mxu0 0.0
    %148 = vmatprep.subr.mxu0 0.0
    %149 = vmatpush1.msra.mxu0 0.0
    %150 = vmatprep.subr.mxu0 0.0
    %151 = vmatpush1.msra.mxu0 0.0
    %152 = vmatprep.subr.mxu0 0.0
    %153 = vmatpush1.msra.mxu0 0.0
    %154 = vmatprep.subr.mxu0 0.0
    %155 = vmatpush1.msra.mxu0 0.0
    %156 = vmatprep.subr.mxu0 0.0
    %157 = vmatpush1.msra.mxu0 0.0
    %158 = vmatprep.subr.mxu0 0.0
    %159 = vmatpush1.msra.mxu0 0.0
    %160 = vmatprep.subr.mxu0 0.0
    %161 = vmatpush1.msra.mxu0 0.0
    %162 = vmatprep.subr.mxu0 0.0
    %163 = vmatpush1.msra.mxu0 0.0
    %164 = vmatprep.subr.mxu0 0.0
    %165 = vmatpush1.msra.mxu0 0.0
    %166 = vmatprep.subr.mxu0 0.0
    %167 = vmatpush1.msra.mxu0 0.0
    %168 = vmatprep.subr.mxu0 0.0
    %169 = vmatpush1.msra.mxu0 0.0
    %170 = vmatprep.subr.mxu0 0.0
    %171 = vmatpush1.msra.mxu0 0.0
    %172 = vmatprep.subr.mxu0 0.0
    %173 = vmatpush1.msra.mxu0 0.0
    %174 = vmatprep.mubr.f32.mxu0 0.0
    %175 = vmatmul.mubr.f32.gmra.mrb[0].mxu0 %v87
    %v176 = vpop.f32.mrb[0].mxu0
    %v177 = vadd.f32 %v48, %v176
    %v178 = vpop.f32.mrb[0].mxu0
    %v179 = vadd.f32 %v48, %v178
    %180 = vmatprep.mubr.f32.mxu0 0.0
    %181 = vmatmul.mubr.f32.gmra.mrb[0].mxu0 %v90
    %v182 = vpop.f32.mrb[0].mxu0
    %v183 = vadd.f32 %v53, %v182
    %v184 = vpop.f32.mrb[0].mxu0
    %v185 = vadd.f32 %v53, %v184
    %186 = vmatprep.mubr.f32.mxu0 0.0
    %187 = vmatmul.mubr.f32.gmra.mrb[0].mxu0 %v93
    %v188 = vpop.f32.mrb[0].mxu0
    %v189 = vadd.f32 %v58, %v188
    %v190 = vpop.f32.mrb[0].mxu0
    %v191 = vadd.f32 %v58, %v190
    %192 = vmatprep.mubr.f32.mxu0 0.0
    %193 = vmatmul.mubr.f32.gmra.mrb[0].mxu0 %v96
    %v194 = vpop.f32.mrb[0].mxu0
    %v195 = vadd.f32 %v63, %v194
    %v196 = vpop.f32.mrb[0].mxu0
    %v197 = vadd.f32 %v63, %v196
    %198 = vmatprep.mubr.f32.mxu0 0.0
    %199 = vmatmul.mubr.f32.gmra.mrb[0].mxu0 %v99
    %v200 = vpop.f32.mrb[0].mxu0
    %v201 = vadd.f32 %v68, %v200
    %v202 = vpop.f32.mrb[0].mxu0
    %v203 = vadd.f32 %v68, %v202
    %204 = vmatprep.mubr.f32.mxu0 0.0
    %205 = vmatmul.mubr.f32.gmra.mrb[0].mxu0 %v102
    %v206 = vpop.f32.mrb[0].mxu0
    %v207 = vadd.f32 %v73, %v206
    %v208 = vpop.f32.mrb[0].mxu0
    %v209 = vadd.f32 %v73, %v208
    %210 = vmatprep.mubr.f32.mxu0 0.0
    %211 = vmatmul.mubr.f32.gmra.mrb[0].mxu0 %v105
    %v212 = vpop.f32.mrb[0].mxu0
    %v213 = vadd.f32 %v78, %v212
    %v214 = vpop.f32.mrb[0].mxu0
    %v215 = vadd.f32 %v78, %v214
    %216 = vmatprep.mubr.f32.mxu0 0.0
    %217 = vmatmul.mubr.f32.gmra.mrb[0].mxu0 %v108
    %v218 = vpop.f32.mrb[0].mxu0
    %v219 = vadd.f32 %v83, %v218
    %v220 = vpop.f32.mrb[0].mxu0
    %v221 = vadd.f32 %v83, %v220
    %222 = vdwg.mxu0
    %v223 = vmax.f32 %v177, 0.0
    %v224 = vmax.f32 %v179, 0.0
    %v225 = vmax.f32 %v183, 0.0
    %v226 = vmax.f32 %v185, 0.0
    %v227 = vmax.f32 %v189, 0.0
    %v228 = vmax.f32 %v191, 0.0
    %v229 = vmax.f32 %v195, 0.0
    %v230 = vmax.f32 %v197, 0.0
    %v231 = vmax.f32 %v201, 0.0
    %v232 = vmax.f32 %v203, 0.0
    %v233 = vmax.f32 %v207, 0.0
    %v234 = vmax.f32 %v209, 0.0
    %v235 = vmax.f32 %v213, 0.0
    %v236 = vmax.f32 %v215, 0.0
    %v237 = vmax.f32 %v219, 0.0
    %v238 = vmax.f32 %v221, 0.0
    %v239 = vld [vmem:[%s3] sm:$0xff]
    %v240 = vld [vmem:[%s3 + $0x8] sm:$0xff]
    %v241 = vld [vmem:[%s4] sm:$0xff]
    %v242 = vld [vmem:[%s4 + $0x8] sm:$0xff]
    %244 = vset.pattern.permute.xlu0 0
    %245 = vperm.xlu0 %244, %v241
    %v246 = vpop.permute.xlu0 %245
    %249 = vset.pattern.permute.xlu0 0
    %250 = vperm.xlu0 %249, %v242
    %v251 = vpop.permute.xlu0 %250
    %vm253 = vcmask 523264
    %v255 = vsel %vm253, %v239, 0
    %v258 = vsel %vm253, %v240, 0
    %260 = vmatprep.subr.mxu0 %v224
    %261 = vmatpush1.msra.mxu0 %v223
    %262 = vmatprep.subr.mxu0 %v226
    %263 = vmatpush1.msra.mxu0 %v225
    %264 = vmatprep.subr.mxu0 %v228
    %265 = vmatpush1.msra.mxu0 %v227
    %266 = vmatprep.subr.mxu0 %v230
    %267 = vmatpush1.msra.mxu0 %v229
    %268 = vmatprep.subr.mxu0 %v232
    %269 = vmatpush1.msra.mxu0 %v231
    %270 = vmatprep.subr.mxu0 %v234
    %271 = vmatpush1.msra.mxu0 %v233
    %272 = vmatprep.subr.mxu0 %v236
    %273 = vmatpush1.msra.mxu0 %v235
    %274 = vmatprep.subr.mxu0 %v238
    %275 = vmatpush1.msra.mxu0 %v237
    %276 = vmatprep.subr.mxu0 0.0
    %277 = vmatpush1.msra.mxu0 0.0
    %278 = vmatprep.subr.mxu0 0.0
    %279 = vmatpush1.msra.mxu0 0.0
    %280 = vmatprep.subr.mxu0 0.0
    %281 = vmatpush1.msra.mxu0 0.0
    %282 = vmatprep.subr.mxu0 0.0
    %283 = vmatpush1.msra.mxu0 0.0
    %284 = vmatprep.subr.mxu0 0.0
    %285 = vmatpush1.msra.mxu0 0.0
    %286 = vmatprep.subr.mxu0 0.0
    %287 = vmatpush1.msra.mxu0 0.0
    %288 = vmatprep.subr.mxu0 0.0
    %289 = vmatpush1.msra.mxu0 0.0
    %290 = vmatprep.subr.mxu0 0.0
    %291 = vmatpush1.msra.mxu0 0.0
    %292 = vmatprep.subr.mxu0 0.0
    %293 = vmatpush1.msra.mxu0 0.0
    %294 = vmatprep.subr.mxu0 0.0
    %295 = vmatpush1.msra.mxu0 0.0
    %296 = vmatprep.subr.mxu0 0.0
    %297 = vmatpush1.msra.mxu0 0.0
    %298 = vmatprep.subr.mxu0 0.0
    %299 = vmatpush1.msra.mxu0 0.0
    %300 = vmatprep.subr.mxu0 0.0
    %301 = vmatpush1.msra.mxu0 0.0
    %302 = vmatprep.subr.mxu0 0.0
    %303 = vmatpush1.msra.mxu0 0.0
    %304 = vmatprep.subr.mxu0 0.0
    %305 = vmatpush1.msra.mxu0 0.0
    %306 = vmatprep.subr.mxu0 0.0
    %307 = vmatpush1.msra.mxu0 0.0
    %308 = vmatprep.subr.mxu0 0.0
    %309 = vmatpush1.msra.mxu0 0.0
    %310 = vmatprep.subr.mxu0 0.0
    %311 = vmatpush1.msra.mxu0 0.0
    %312 = vmatprep.subr.mxu0 0.0
    %313 = vmatpush1.msra.mxu0 0.0
    %314 = vmatprep.subr.mxu0 0.0
    %315 = vmatpush1.msra.mxu0 0.0
    %316 = vmatprep.subr.mxu0 0.0
    %317 = vmatpush1.msra.mxu0 0.0
    %318 = vmatprep.subr.mxu0 0.0
    %319 = vmatpush1.msra.mxu0 0.0
    %320 = vmatprep.subr.mxu0 0.0
    %321 = vmatpush1.msra.mxu0 0.0
    %322 = vmatprep.subr.mxu0 0.0
    %323 = vmatpush1.msra.mxu0 0.0
    %324 = vmatprep.mubr.f32.mxu0 0.0
    %325 = vmatmul.mubr.f32.gmra.mrb[0].mxu0 %v255
    %v326 = vpop.f32.mrb[0].mxu0
    %v327 = vadd.f32 %v246, %v326
    %v328 = vpop.f32.mrb[0].mxu0
    %v329 = vadd.f32 %v246, %v328
    %330 = vmatprep.mubr.f32.mxu0 0.0
    %331 = vmatmul.mubr.f32.gmra.mrb[0].mxu0 %v258
    %v332 = vpop.f32.mrb[0].mxu0
    %v333 = vadd.f32 %v251, %v332
    %v334 = vpop.f32.mrb[0].mxu0
    %v335 = vadd.f32 %v251, %v334
    %336 = vdwg.mxu0
    %337 = vst [vmem:[#allocation2] sm:$0xff] %v327
    %338 = vst [vmem:[#allocation2 + $0x8] sm:$0xff] %v329
    %339 = vst [vmem:[#allocation2 + $0x10] sm:$0xff] %v333
    %340 = vst [vmem:[#allocation2 + $0x18] sm:$0xff] %v335
    // Predicated region
    $region22: #{simple_nn_forward.1} parent=1 // pred_check
      _
    $region23: #{simple_nn_forward.1} parent=1 // pred_check_branch
      %342 = sbr.rel (0) target = $region25
    $region24: #{simple_nn_forward.1} parent=1 // pred_region
      %s344 = ssub.s32 512, 512
      %345 = vsyncadd [#allocation3], %s344
      %s346 = sshll.u32 [#allocation2], 4
      %s347 = int_to_ptr.vmem [resolvable:$true] %s346
      %352 = dma.vmem_to_hbm [thread:$0]  %s347, 512, %s5, [#allocation3], 256, 256, 16
    $region25: #{simple_nn_forward.1} parent=1 // pred_fallthru
      _
    // Predicated region
    $region26: #{simple_nn_forward.1} parent=1 // pred_check
      _
    $region27: #{simple_nn_forward.1} parent=1 // pred_check_branch
      %354 = sbr.rel (0) target = $region29
    $region28: #{simple_nn_forward.1} parent=1 // pred_region
      %355 = dma.done [#allocation3], 512
    $region29: #{simple_nn_forward.1} parent=1 // pred_fallthru
      _
    %356 = vsyncpa [#allocation3], 1

</llo_original>
